<compile_context>
chip_gen: v7x
topology: tpu7x:2x2x1
jax: 0.10.0
libtpu: 0.0.40
codegen_flags: <defaults>
</compile_context>

<pallas_src>
import functools

import jax
import jax.numpy as jnp
from jax.experimental import pallas as pl
from jax.experimental.pallas import tpu as pltpu

EPS = 1e-5


def _round_up(x, m):
    return ((x + m - 1) // m) * m


def _vmem_limit_bytes():
    """Generation-aware scoped-VMEM limit (~75% of physical, capped at 96 MiB)."""
    cap = 128 * 1024 * 1024
    try:
        info = pltpu.get_tpu_info()
        cap = int(getattr(info, "vmem_capacity_bytes", cap))
    except Exception:
        pass
    return min((cap * 3) // 4, 96 * 1024 * 1024)


def _choose_tm(M, tm_req):
    tm = 256 if tm_req is None else tm_req
    tm = max(8, _round_up(min(tm, M), 8))
    # Keep at least two row blocks so both v7x TensorCores get work.
    if M > 8 and pl.cdiv(M, tm) < 2:
        tm = max(8, _round_up(pl.cdiv(M, 2), 8))
    return tm


def _choose_tn(D, w_itemsize, vmem_limit):
    # Keep the whole weight VMEM-resident whenever it comfortably fits (it is
    # then DMA'd exactly once); only column-tile for very large embedding dims.
    if D * D * w_itemsize <= vmem_limit // 3 or D % 128 != 0:
        return D
    for cand in (1024, 768, 512, 384, 256, 128):
        if cand < D and D % cand == 0:
            return cand
    return D


def _prenorm_linear_kernel(x_ref, g_ref, b_ref, w_ref, wb_ref, o_ref, y_ref):
    # x_ref: (tm, D) rows; g/b: (1, D) LN affine; w: (D, tn); wb: (1, tn)
    # y_ref: (tm, D) VMEM scratch holding LN(x)*gamma+beta in the MXU dtype.
    @pl.when(pl.program_id(1) == 0)
    def _():
        x = x_ref[...].astype(jnp.float32)
        mean = jnp.mean(x, axis=-1, keepdims=True)
        # One-pass biased variance (PyTorch nn.LayerNorm), clamped for safety
        # against garbage rows in the ragged last block.
        var = jnp.maximum(
            jnp.mean(x * x, axis=-1, keepdims=True) - mean * mean, 0.0)
        # Fold gamma into the rsqrt scale (saves one full tm*D VALU pass).
        scale = jax.lax.rsqrt(var + EPS) * g_ref[...].astype(jnp.float32)
        y = (x - mean) * scale + b_ref[...].astype(jnp.float32)
        y_ref[...] = y.astype(y_ref.dtype)

    # MXU in the weight dtype (bf16 in practice) with f32 accumulation.
    out = jnp.dot(y_ref[...], w_ref[...], preferred_element_type=jnp.float32)
    out = out + wb_ref[...].astype(jnp.float32)
    o_ref[...] = out.astype(o_ref.dtype)


@functools.partial(jax.jit, static_argnames=("tm", "tn"))
def prenorm_linear(x, gamma, beta, w, w_bias, *, tm=None, tn=None):
    """x: (B, N, D) -> (B, N, D);  fn = Linear(D, D) applied after LayerNorm(D)."""
    B, N, D = x.shape
    M = B * N

    vmem_limit = _vmem_limit_bytes()
    w_itemsize = jnp.dtype(w.dtype).itemsize
    if tn is None:
        tn = _choose_tn(D, w_itemsize, vmem_limit)
    assert tn == D or (tn % 128 == 0 and D % tn == 0), \
        "tn must be a 128-multiple dividing D (or equal to D)"
    tm = _choose_tm(M, tm)

    x2 = x.reshape(M, D)
    g2 = gamma.reshape(1, D)
    b2 = beta.reshape(1, D)
    wb2 = w_bias.reshape(1, D)

    grid = (pl.cdiv(M, tm), pl.cdiv(D, tn))

    x_bytes = jnp.dtype(x.dtype).itemsize
    cost = pl.CostEstimate(
        flops=2 * M * D * D + 8 * M * D,
        transcendentals=M,
        bytes_accessed=(M * D * x_bytes                       # x read
                        + D * D * w_itemsize                  # W read (resident)
                        + 3 * D * 4                           # gamma, beta, bias
                        + M * D * x_bytes),                   # out write
    )

    out = pl.pallas_call(
        _prenorm_linear_kernel,
        out_shape=jax.ShapeDtypeStruct((M, D), x.dtype),
        grid_spec=pltpu.PrefetchScalarGridSpec(
            num_scalar_prefetch=0,
            grid=grid,
            in_specs=[
                pl.BlockSpec((tm, D), lambda i, j: (i, 0)),   # x rows (full D, fetched once per i)
                pl.BlockSpec((1, D), lambda i, j: (0, 0)),    # gamma
                pl.BlockSpec((1, D), lambda i, j: (0, 0)),    # beta
                pl.BlockSpec((D, tn), lambda i, j: (0, j)),   # W (resident when tn == D)
                pl.BlockSpec((1, tn), lambda i, j: (0, j)),   # W bias column tile
            ],
            out_specs=pl.BlockSpec((tm, tn), lambda i, j: (i, j)),
            scratch_shapes=[pltpu.VMEM((tm, D), w.dtype)],    # cached LN output
        ),
        compiler_params=pltpu.CompilerParams(
            # j (column) axis reuses the per-row-block LN scratch -> "arbitrary".
            dimension_semantics=("parallel", "arbitrary"),
            vmem_limit_bytes=vmem_limit,
        ),
        cost_estimate=cost,
    )(x2, g2, b2, w, wb2)

    return out.reshape(B, N, D)


def _reference(x, gamma, beta, w, w_bias):
    xf = x.astype(jnp.float32)
    mean = jnp.mean(xf, axis=-1, keepdims=True)
    var = jnp.mean((xf - mean) ** 2, axis=-1, keepdims=True)
    xhat = (xf - mean) / jnp.sqrt(var + EPS)
    y = xhat * gamma.astype(jnp.float32) + beta.astype(jnp.float32)
    out = y @ w.astype(jnp.float32) + w_bias.astype(jnp.float32)
    return out.astype(x.dtype)


if __name__ == "__main__":
    key = jax.random.PRNGKey(0)
    kx, kw, kx2, kx3 = jax.random.split(key, 4)

    B, N, D = 2, 8, 32
    x = jax.random.normal(kx, (B, N, D), dtype=jnp.float32)
    # nn.LayerNorm(dim) default init: weight=1, bias=0
    gamma = jnp.ones((D,), jnp.float32)
    beta = jnp.zeros((D,), jnp.float32)
    # fn = Linear(dim, dim); bf16 weights feed the MXU at full rate
    w = (jax.random.normal(kw, (D, D), dtype=jnp.float32) * 0.02).astype(jnp.bfloat16)
    w_bias = jnp.zeros((D,), jnp.float32)

    out = jax.block_until_ready(prenorm_linear(x, gamma, beta, w, w_bias))
    ref = _reference(x, gamma, beta, w, w_bias)
    assert out.shape == (B, N, D)
    assert jnp.allclose(out, ref, atol=2e-2, rtol=2e-2), "mismatch vs reference"

    # Ragged row count (M % tm != 0) -> exercises the Pallas-masked edge block
    # (no wrapper-side padding/slicing anymore).
    B2, N2 = 2, 13
    x_odd = jax.random.normal(kx2, (B2, N2, D), dtype=jnp.float32)
    out_odd = jax.block_until_ready(prenorm_linear(x_odd, gamma, beta, w, w_bias))
    ref_odd = _reference(x_odd, gamma, beta, w, w_bias)
    assert out_odd.shape == (B2, N2, D)
    assert jnp.allclose(out_odd, ref_odd, atol=2e-2, rtol=2e-2), "mismatch (ragged tail)"

    # bf16 activations in / bf16 out: halves activation HBM traffic.
    x_bf = jax.random.normal(kx3, (B, N, D), dtype=jnp.float32).astype(jnp.bfloat16)
    out_bf = jax.block_until_ready(prenorm_linear(x_bf, gamma, beta, w, w_bias))
    ref_bf = _reference(x_bf, gamma, beta, w, w_bias)
    assert out_bf.dtype == jnp.bfloat16
    assert jnp.allclose(out_bf.astype(jnp.float32), ref_bf.astype(jnp.float32),
                        atol=5e-2, rtol=5e-2), "mismatch (bf16 I/O)"

    print("KERNEL_OK")
</pallas_src>

<mosaic_0001>
module attributes {stable_mosaic.version = 11 : i64} {
  func.func @_prenorm_linear_kernel(%arg0: i32, %arg1: i32, %arg2: memref<8x32xf32, #tpu.memory_space<vmem>>, %arg3: memref<1x32xf32, #tpu.memory_space<vmem>>, %arg4: memref<1x32xf32, #tpu.memory_space<vmem>>, %arg5: memref<32x32xbf16, #tpu.memory_space<vmem>>, %arg6: memref<1x32xf32, #tpu.memory_space<vmem>>, %arg7: memref<8x32xf32, #tpu.memory_space<vmem>>, %arg8: memref<8x32xbf16, #tpu.memory_space<vmem>>) attributes {dimension_semantics = [#tpu.dimension_semantics<parallel>, #tpu.dimension_semantics<arbitrary>], iteration_bounds = array<i64: 2, 1>, scalar_prefetch = 0 : i64, scratch_operands = 1 : i64, tpu.core_type = #tpu.core_type<tc>, window_params = [{transform_indices = @transform_0, window_bounds = array<i64: 8, 32>}, {pipeline_mode = #tpu.pipeline_mode<synchronous>, transform_indices = @transform_1, window_bounds = array<i64: 1, 32>}, {pipeline_mode = #tpu.pipeline_mode<synchronous>, transform_indices = @transform_2, window_bounds = array<i64: 1, 32>}, {transform_indices = @transform_3, window_bounds = array<i64: 32, 32>}, {transform_indices = @transform_4, window_bounds = array<i64: 1, 32>}, {transform_indices = @transform_5, window_bounds = array<i64: 8, 32>}]} {
    %c0_i32 = arith.constant 0 : i32
    %0 = arith.cmpi eq, %arg1, %c0_i32 : i32
    %1 = arith.extui %0 : i1 to i32
    %c0_i32_0 = arith.constant 0 : i32
    %2 = arith.cmpi ne, %1, %c0_i32_0 : i32
    scf.if %2 {
      %c0_8 = arith.constant 0 : index
      %c0_9 = arith.constant 0 : index
      %10 = vector.load %arg2[%c0_8, %c0_9] : memref<8x32xf32, #tpu.memory_space<vmem>>, vector<8x32xf32>
      %cst_10 = arith.constant dense<0.000000e+00> : vector<8xf32>
      %11 = vector.multi_reduction <add>, %10, %cst_10 [1] : vector<8x32xf32> to vector<8xf32>
      %12 = vector.shape_cast %11 : vector<8xf32> to vector<8x1xf32>
      %cst_11 = arith.constant 3.200000e+01 : f32
      %13 = vector.broadcast %cst_11 : f32 to vector<8x1xf32>
      %14 = arith.divf %12, %13 : vector<8x1xf32>
      %15 = arith.mulf %10, %10 : vector<8x32xf32>
      %cst_12 = arith.constant dense<0.000000e+00> : vector<8xf32>
      %16 = vector.multi_reduction <add>, %15, %cst_12 [1] : vector<8x32xf32> to vector<8xf32>
      %17 = vector.shape_cast %16 : vector<8xf32> to vector<8x1xf32>
      %cst_13 = arith.constant 3.200000e+01 : f32
      %18 = vector.broadcast %cst_13 : f32 to vector<8x1xf32>
      %19 = arith.divf %17, %18 : vector<8x1xf32>
      %20 = arith.mulf %14, %14 : vector<8x1xf32>
      %21 = arith.subf %19, %20 : vector<8x1xf32>
      %cst_14 = arith.constant 0.000000e+00 : f32
      %22 = vector.broadcast %cst_14 : f32 to vector<8x1xf32>
      %23 = arith.maximumf %21, %22 : vector<8x1xf32>
      %cst_15 = arith.constant 9.99999974E-6 : f32
      %24 = vector.broadcast %cst_15 : f32 to vector<8x1xf32>
      %25 = arith.addf %23, %24 : vector<8x1xf32>
      %26 = math.rsqrt %25 : vector<8x1xf32>
      %c0_16 = arith.constant 0 : index
      %c0_17 = arith.constant 0 : index
      %27 = vector.load %arg3[%c0_16, %c0_17] : memref<1x32xf32, #tpu.memory_space<vmem>>, vector<1x32xf32>
      %28 = vector.broadcast %26 : vector<8x1xf32> to vector<8x32xf32>
      %29 = vector.broadcast %27 : vector<1x32xf32> to vector<8x32xf32>
      %30 = arith.mulf %28, %29 : vector<8x32xf32>
      %31 = vector.broadcast %14 : vector<8x1xf32> to vector<8x32xf32>
      %32 = arith.subf %10, %31 : vector<8x32xf32>
      %33 = arith.mulf %32, %30 : vector<8x32xf32>
      %c0_18 = arith.constant 0 : index
      %c0_19 = arith.constant 0 : index
      %34 = vector.load %arg4[%c0_18, %c0_19] : memref<1x32xf32, #tpu.memory_space<vmem>>, vector<1x32xf32>
      %35 = vector.broadcast %34 : vector<1x32xf32> to vector<8x32xf32>
      %36 = arith.addf %33, %35 : vector<8x32xf32>
      %37 = arith.truncf %36 : vector<8x32xf32> to vector<8x32xbf16>
      %c0_20 = arith.constant 0 : index
      %c0_21 = arith.constant 0 : index
      %38 = vector.load %arg8[%c0_20, %c0_21] : memref<8x32xbf16, #tpu.memory_space<vmem>>, vector<8x32xbf16>
      tpu.vector_store %arg8[%c0_20, %c0_21], %37 {strides = array<i32>} : memref<8x32xbf16, #tpu.memory_space<vmem>>, vector<8x32xbf16>,
    } else {
    }
    %c0 = arith.constant 0 : index
    %c0_1 = arith.constant 0 : index
    %3 = vector.load %arg8[%c0, %c0_1] : memref<8x32xbf16, #tpu.memory_space<vmem>>, vector<8x32xbf16>
    %c0_2 = arith.constant 0 : index
    %c0_3 = arith.constant 0 : index
    %4 = vector.load %arg5[%c0_2, %c0_3] : memref<32x32xbf16, #tpu.memory_space<vmem>>, vector<32x32xbf16>
    %cst = arith.constant dense<0.000000e+00> : vector<8x32xf32>
    %5 = tpu.matmul %3, %4, %cst {dimension_numbers = #tpu.dot_dimension_numbers<[1], [0], [0], [1], [0, 0, 1, 1], [], []>} : vector<8x32xbf16>, vector<32x32xbf16>, vector<8x32xf32> -> vector<8x32xf32>
    %c0_4 = arith.constant 0 : index
    %c0_5 = arith.constant 0 : index
    %6 = vector.load %arg6[%c0_4, %c0_5] : memref<1x32xf32, #tpu.memory_space<vmem>>, vector<1x32xf32>
    %7 = vector.broadcast %6 : vector<1x32xf32> to vector<8x32xf32>
    %8 = arith.addf %5, %7 : vector<8x32xf32>
    %c0_6 = arith.constant 0 : index
    %c0_7 = arith.constant 0 : index
    %9 = vector.load %arg7[%c0_6, %c0_7] : memref<8x32xf32, #tpu.memory_space<vmem>>, vector<8x32xf32>
    tpu.vector_store %arg7[%c0_6, %c0_7], %8 {strides = array<i32>} : memref<8x32xf32, #tpu.memory_space<vmem>>, vector<8x32xf32>,
    return
  }
  func.func @transform_0(%arg0: i32, %arg1: i32) -> (i32, i32) {
    %c0_i32 = arith.constant 0 : i32
    %c0_i32_0 = arith.constant 0 : i32
    return %arg0, %c0_i32 : i32, i32
  }
  func.func @transform_1(%arg0: i32, %arg1: i32) -> (i32, i32) {
    %c0_i32 = arith.constant 0 : i32
    %c0_i32_0 = arith.constant 0 : i32
    %c0_i32_1 = arith.constant 0 : i32
    return %c0_i32, %c0_i32_0 : i32, i32
  }
  func.func @transform_2(%arg0: i32, %arg1: i32) -> (i32, i32) {
    %c0_i32 = arith.constant 0 : i32
    %c0_i32_0 = arith.constant 0 : i32
    %c0_i32_1 = arith.constant 0 : i32
    return %c0_i32, %c0_i32_0 : i32, i32
  }
  func.func @transform_3(%arg0: i32, %arg1: i32) -> (i32, i32) {
    %c0_i32 = arith.constant 0 : i32
    %c0_i32_0 = arith.constant 0 : i32
    return %c0_i32, %arg1 : i32, i32
  }
  func.func @transform_4(%arg0: i32, %arg1: i32) -> (i32, i32) {
    %c0_i32 = arith.constant 0 : i32
    %c0_i32_0 = arith.constant 0 : i32
    return %c0_i32, %arg1 : i32, i32
  }
  func.func @transform_5(%arg0: i32, %arg1: i32) -> (i32, i32) {
    %c0_i32 = arith.constant 0 : i32
    return %arg0, %arg1 : i32, i32
  }
}

</mosaic_0001>

<llo_original>
// kernel: prenorm_linear.1
$region0: #{prenorm_linear.1}
  #allocation0 [shape = 'u32[]', space=smem, size = 0x4, offset = 0x4, fixed_abs, tag = 'smem constant byte address 0x4 - core index']
  #allocation1 [shape = 'u32[144,128]{1,0:T(1,128)}', space=vmem, size = 0x12000, scoped, tag = 'internal scratch']
  #allocation2 [shape = 'bf16[8,32]{1,0:T(8,128)(2,1)}', space=vmem, size = 0x800, scoped, tag = 'scratch operand']
  %s0 = inlined_call_operand.hbm [shape: f32[16,32], index: 0, kind: input, shape index: {}]
  %s1 = inlined_call_operand.hbm [shape: f32[1,32], index: 1, kind: input, shape index: {}]
  %s2 = inlined_call_operand.hbm [shape: f32[1,32], index: 2, kind: input, shape index: {}]
  %s3 = inlined_call_operand.hbm [shape: bf16[32,32], index: 3, kind: input, shape index: {}]
  %s4 = inlined_call_operand.hbm [shape: f32[1,32], index: 4, kind: input, shape index: {}]
  %s5 = inlined_call_operand.hbm [shape: f32[16,32], index: 5, kind: output, shape index: {}]
  %s6 = sld [smem:[#allocation0]]
  $region77: #{prenorm_linear.1} parent=0
    _
  %s8 = ssub.s32 1, %s6
  %s9 = scalar_select 0, %s8, %s6
  $region1: #{prenorm_linear.1} parent=0
    #allocation3 [shape = 'u8[8192]{0}', space=vmem, size = 0x2000, scoped, tag = 'input window, operand 0']
    #allocation4 [shape = 's32[2]{0}', space=sflag, size = 0x8, scoped, tag = 'scoped memory for prenorm_linear.1']
    #allocation5 [shape = 's32[2]{0}', space=sflag, size = 0x8, scoped, tag = 'scoped memory for prenorm_linear.1']
    #allocation6 [shape = 'u8[512]{0}', space=vmem, size = 0x400, scoped, tag = 'input window, operand 1, single buffered']
    #allocation7 [shape = 's32[1]{0}', space=sflag, size = 0x4, scoped, tag = 'scoped memory for prenorm_linear.1']
    #allocation8 [shape = 'u8[512]{0}', space=vmem, size = 0x400, scoped, tag = 'input window, operand 2, single buffered']
    #allocation9 [shape = 'u8[8192]{0}', space=vmem, size = 0x2000, scoped, tag = 'input window, operand 3, single buffered']
    #allocation10 [shape = 's32[1]{0}', space=sflag, size = 0x4, scoped, tag = 'scoped memory for prenorm_linear.1']
    #allocation11 [shape = 'u8[512]{0}', space=vmem, size = 0x400, scoped, tag = 'input window, operand 4, single buffered']
    #allocation12 [shape = 'u8[8192]{0}', space=vmem, size = 0x2000, scoped, tag = 'output window, operand 0']
    %10 = vsyncpa [#allocation4], 0
    %s11 = scalar_lea.sflag [#allocation4], 1
    %12 = vsyncpa %s11, 0
    %13 = vsyncpa [#allocation7], 0
    %14 = vsyncpa [#allocation10], 0
    %15 = vsyncpa [#allocation5], 0
    %s16 = scalar_lea.sflag [#allocation5], 1
    %17 = vsyncpa %s16, 0
    loop: start=0, step=1, limit=4
    $region2: #{prenorm_linear.1} parent=1 // loop_pre_header
      _
    $region3: #{prenorm_linear.1} parent=1 // loop_header
      %s19 = sphi 0, %s23
      %p20 = scmp.ge.s32.totalorder %s19, 4
      %s26 = sphi 0, %s38
      %s27 = sphi 0, %s34
      %s28 = sphi 0, %s26
      %s29 = sphi 0, %s27
      %s30 = sphi 0, %s28
      %s31 = sphi 0, %s29
      %s41 = sphi 0, %s43
      %s44 = sphi 0, %s41
      %s45 = sphi 0, %s44
      %s61 = sphi 0, %s45
      %s65 = sphi 0, %s65
      %s67 = sphi 0, %s65
      %s68 = sphi 0, %s67
      %s82 = sphi 0, %s68
      %s86 = sphi 0, %s86
      %s88 = sphi 0, %s86
      %s89 = sphi 0, %s88
      %s103 = sphi 0, %s89
      %s109 = sphi 0, %s111
      %s112 = sphi 0, %s109
      %s113 = sphi 0, %s112
      %s129 = sphi 0, %s113
      %s135 = sphi 0, %s137
      %s138 = sphi 0, %s135
      %s139 = sphi 0, %s138
      %s155 = sphi 0, %s139
      %s163 = sphi 0, %s165
      %s166 = sphi 0, %s163
      %s167 = sphi 0, %s166
      %s183 = sphi 0, %s167
    $region4: #{prenorm_linear.1} parent=1 // loop_header_branch
      %22 = sbr.rel (%p20) target = $region8
    $region5: #{prenorm_linear.1} parent=1 // loop_body
      %s24 = ssub.s32 %s19, 1
      %s25 = ssub.s32 %s19, 2
      %s32 = sadd.s32 1, %s27
      %p33 = scmp.ge.s32.totalorder %s32, 1
      %s34 = scalar_select %p33, 0, %s32
      %s35 = sadd.s32 1, %s26
      %s36 = scalar_select %p33, %s35, %s26
      %p37 = scmp.ge.s32.totalorder %s36, 2
      %s38 = scalar_select %p37, 0, %s36
      %s39 = ssub.s32 %s26, %s38
      %p40 = scmp.eq.s32.totalorder %s39, 0
      %s42 = sadd.s32 %s41, 1
      %s43 = scalar_select %p40, %s41, %s42
      %p46 = pneg %p40
      %p47 = scmp.eq.s32.totalorder %s19, 1
      %p48 = por %p46, %p47
      %p49 = scmp.ne.s32.totalorder %s41, %s44
      %p50 = scmp.eq.s32.totalorder %s19, 0
      %p51 = por %p49, %p50
      %p52 = scmp.ne.s32.totalorder %s41, %s44
      %p53 = scmp.eq.s32.totalorder %s24, 1
      %p54 = por %p52, %p53
      %p55 = scmp.ne.s32.totalorder %s44, %s45
      %p56 = scmp.eq.s32.totalorder %s24, 0
      %p57 = por %p55, %p56
      %p58 = scmp.ne.s32.totalorder %s44, %s45
      %p59 = scmp.eq.s32.totalorder %s25, 1
      %p60 = por %p58, %p59
      %p62 = scmp.ne.s32.totalorder %s45, %s61
      %p63 = scmp.eq.s32.totalorder %s25, 0
      %p64 = por %p62, %p63
      %s66 = sadd.s32 %s65, 1
      %p69 = scmp.eq.s32.totalorder %s19, 1
      %p70 = scmp.ne.s32.totalorder %s65, %s67
      %p71 = scmp.eq.s32.totalorder %s19, 0
      %p72 = por %p70, %p71
      %p73 = scmp.ne.s32.totalorder %s65, %s67
      %p74 = scmp.eq.s32.totalorder %s24, 1
      %p75 = por %p73, %p74
      %p76 = scmp.ne.s32.totalorder %s67, %s68
      %p77 = scmp.eq.s32.totalorder %s24, 0
      %p78 = por %p76, %p77
      %p79 = scmp.ne.s32.totalorder %s67, %s68
      %p80 = scmp.eq.s32.totalorder %s25, 1
      %p81 = por %p79, %p80
      %p83 = scmp.ne.s32.totalorder %s68, %s82
      %p84 = scmp.eq.s32.totalorder %s25, 0
      %p85 = por %p83, %p84
      %s87 = sadd.s32 %s86, 1
      %p90 = scmp.eq.s32.totalorder %s19, 1
      %p91 = scmp.ne.s32.totalorder %s86, %s88
      %p92 = scmp.eq.s32.totalorder %s19, 0
      %p93 = por %p91, %p92
      %p94 = scmp.ne.s32.totalorder %s86, %s88
      %p95 = scmp.eq.s32.totalorder %s24, 1
      %p96 = por %p94, %p95
      %p97 = scmp.ne.s32.totalorder %s88, %s89
      %p98 = scmp.eq.s32.totalorder %s24, 0
      %p99 = por %p97, %p98
      %p100 = scmp.ne.s32.totalorder %s88, %s89
      %p101 = scmp.eq.s32.totalorder %s25, 1
      %p102 = por %p100, %p101
      %p104 = scmp.ne.s32.totalorder %s89, %s103
      %p105 = scmp.eq.s32.totalorder %s25, 0
      %p106 = por %p104, %p105
      %s107 = ssub.s32 %s27, %s34
      %p108 = scmp.eq.s32.totalorder %s107, 0
      %s110 = sadd.s32 %s109, 1
      %s111 = scalar_select %p108, %s109, %s110
      %p114 = pneg %p108
      %p115 = scmp.eq.s32.totalorder %s19, 1
      %p116 = por %p114, %p115
      %p117 = scmp.ne.s32.totalorder %s109, %s112
      %p118 = scmp.eq.s32.totalorder %s19, 0
      %p119 = por %p117, %p118
      %p120 = scmp.ne.s32.totalorder %s109, %s112
      %p121 = scmp.eq.s32.totalorder %s24, 1
      %p122 = por %p120, %p121
      %p123 = scmp.ne.s32.totalorder %s112, %s113
      %p124 = scmp.eq.s32.totalorder %s24, 0
      %p125 = por %p123, %p124
      %p126 = scmp.ne.s32.totalorder %s112, %s113
      %p127 = scmp.eq.s32.totalorder %s25, 1
      %p128 = por %p126, %p127
      %p130 = scmp.ne.s32.totalorder %s113, %s129
      %p131 = scmp.eq.s32.totalorder %s25, 0
      %p132 = por %p130, %p131
      %s133 = ssub.s32 %s27, %s34
      %p134 = scmp.eq.s32.totalorder %s133, 0
      %s136 = sadd.s32 %s135, 1
      %s137 = scalar_select %p134, %s135, %s136
      %p140 = pneg %p134
      %p141 = scmp.eq.s32.totalorder %s19, 1
      %p142 = por %p140, %p141
      %p143 = scmp.ne.s32.totalorder %s135, %s138
      %p144 = scmp.eq.s32.totalorder %s19, 0
      %p145 = por %p143, %p144
      %p146 = scmp.ne.s32.totalorder %s135, %s138
      %p147 = scmp.eq.s32.totalorder %s24, 1
      %p148 = por %p146, %p147
      %p149 = scmp.ne.s32.totalorder %s138, %s139
      %p150 = scmp.eq.s32.totalorder %s24, 0
      %p151 = por %p149, %p150
      %p152 = scmp.ne.s32.totalorder %s138, %s139
      %p153 = scmp.eq.s32.totalorder %s25, 1
      %p154 = por %p152, %p153
      %p156 = scmp.ne.s32.totalorder %s139, %s155
      %p157 = scmp.eq.s32.totalorder %s25, 0
      %p158 = por %p156, %p157
      %s159 = ssub.s32 %s26, %s38
      %s160 = ssub.s32 %s27, %s34
      %s161 = sor.u32 %s159, %s160
      %p162 = scmp.eq.s32.totalorder %s161, 0
      %s164 = sadd.s32 %s163, 1
      %s165 = scalar_select %p162, %s163, %s164
      %p168 = pneg %p162
      %p169 = scmp.eq.s32.totalorder %s19, 1
      %p170 = por %p168, %p169
      %p171 = scmp.ne.s32.totalorder %s163, %s166
      %p172 = scmp.eq.s32.totalorder %s19, 0
      %p173 = por %p171, %p172
      %p174 = scmp.ne.s32.totalorder %s163, %s166
      %p175 = scmp.eq.s32.totalorder %s24, 1
      %p176 = por %p174, %p175
      %p177 = scmp.ne.s32.totalorder %s166, %s167
      %p178 = scmp.eq.s32.totalorder %s24, 0
      %p179 = por %p177, %p178
      %p180 = scmp.ne.s32.totalorder %s166, %s167
      %p181 = scmp.eq.s32.totalorder %s25, 1
      %p182 = por %p180, %p181
      %p184 = scmp.ne.s32.totalorder %s167, %s183
      %p185 = scmp.eq.s32.totalorder %s25, 0
      %p186 = por %p184, %p185
      %p187 = scmp.le.s32.totalorder 1, %s19
      %p188 = scmp.lt.s32.totalorder %s19, 3
      %p189 = pnand %p187, %p188
      %p190 = pneg %p189
      // Predicated region
      $region9: #{prenorm_linear.1} parent=5 // pred_check
        _
      $region10: #{prenorm_linear.1} parent=5 // pred_check_branch
        %192 = sbr.rel (%p189) target = $region12
      $region11: #{prenorm_linear.1} parent=5 // pred_region
        %s193 = ssub.s32 %s19, 1
        // Predicated region
        $region13: #{prenorm_linear.1} parent=11 // pred_check
          %p194 = pneg %p78
        $region14: #{prenorm_linear.1} parent=11 // pred_check_branch
          %196 = sbr.rel (%p194) target = $region16
        $region15: #{prenorm_linear.1} parent=11 // pred_region
          %s198 = ssub.s32 16, 16
          %199 = vsyncadd [#allocation7], %s198
          %s201 = sshll.u32 [#allocation6], 4
          %s202 = int_to_ptr.vmem [resolvable:$true] %s201
          %204 = dma.hbm_to_vmem [thread:$0]  %s1, 16, %s202, [#allocation7]
        $region16: #{prenorm_linear.1} parent=11 // pred_fallthru
          _
        // Predicated region
        $region17: #{prenorm_linear.1} parent=11 // pred_check
          %p205 = pneg %p99
        $region18: #{prenorm_linear.1} parent=11 // pred_check_branch
          %207 = sbr.rel (%p205) target = $region20
        $region19: #{prenorm_linear.1} parent=11 // pred_region
          %s209 = ssub.s32 16, 16
          %210 = vsyncadd [#allocation7], %s209
          %s212 = sshll.u32 [#allocation8], 4
          %s213 = int_to_ptr.vmem [resolvable:$true] %s212
          %215 = dma.hbm_to_vmem [thread:$0]  %s2, 16, %s213, [#allocation7]
        $region20: #{prenorm_linear.1} parent=11 // pred_fallthru
          _
        // Predicated region
        $region21: #{prenorm_linear.1} parent=11 // pred_check
          %p216 = pneg %p125
        $region22: #{prenorm_linear.1} parent=11 // pred_check_branch
          %218 = sbr.rel (%p216) target = $region24
        $region23: #{prenorm_linear.1} parent=11 // pred_region
          %s220 = ssub.s32 256, 256
          %221 = vsyncadd [#allocation10], %s220
          %s222 = smul.addr %s29, 64
          %s223 = scalar_lea.hbm %s3, %s222
          %s224 = sshll.u32 [#allocation9], 4
          %s225 = int_to_ptr.vmem [resolvable:$true] %s224
          %230 = dma.hbm_to_vmem [thread:$0]  %s223, 256, %s225, [#allocation10], 64, 64, 4
        $region24: #{prenorm_linear.1} parent=11 // pred_fallthru
          _
        // Predicated region
        $region25: #{prenorm_linear.1} parent=11 // pred_check
          %p231 = pneg %p151
        $region26: #{prenorm_linear.1} parent=11 // pred_check_branch
          %233 = sbr.rel (%p231) target = $region28
        $region27: #{prenorm_linear.1} parent=11 // pred_region
          %s235 = ssub.s32 16, 16
          %236 = vsyncadd [#allocation10], %s235
          %s237 = smul.addr %s29, 16
          %s238 = scalar_lea.hbm %s4, %s237
          %s240 = sshll.u32 [#allocation11], 4
          %s241 = int_to_ptr.vmem [resolvable:$true] %s240
          %243 = dma.hbm_to_vmem [thread:$0]  %s238, 16, %s241, [#allocation10]
        $region28: #{prenorm_linear.1} parent=11 // pred_fallthru
          _
      $region12: #{prenorm_linear.1} parent=5 // pred_fallthru
        _
      %p244 = scmp.lt.s32.totalorder %s19, 2
      // Predicated region
      $region29: #{prenorm_linear.1} parent=5 // pred_check
        %p245 = pneg %p244
      $region30: #{prenorm_linear.1} parent=5 // pred_check_branch
        %247 = sbr.rel (%p245) target = $region32
      $region31: #{prenorm_linear.1} parent=5 // pred_region
        // Predicated region
        $region33: #{prenorm_linear.1} parent=31 // pred_check
          %p248 = pneg %p51
        $region34: #{prenorm_linear.1} parent=31 // pred_check_branch
          %250 = sbr.rel (%p248) target = $region36
        $region35: #{prenorm_linear.1} parent=31 // pred_region
          %s251 = sand.u32 %s41, 1
          %s252 = scalar_lea.sflag [#allocation4], %s251
          %s253 = sand.u32 %s41, 1
          %s254 = smul.addr %s253, 8
          %s255 = scalar_lea.vmem [#allocation3], %s254
          %s257 = ssub.s32 128, 128
          %258 = vsyncadd %s252, %s257
          %s259 = smul.addr %s26, 128
          %s260 = scalar_lea.hbm %s0, %s259
          %s262 = sshll.u32 %s255, 4
          %s263 = int_to_ptr.vmem [resolvable:$true] %s262
          %265 = dma.hbm_to_vmem [thread:$0]  %s260, 128, %s263, %s252
        $region36: #{prenorm_linear.1} parent=31 // pred_fallthru
          _
      $region32: #{prenorm_linear.1} parent=5 // pred_fallthru
        _
      %p266 = scmp.le.s32.totalorder 1, %s19
      %p267 = scmp.lt.s32.totalorder %s19, 3
      %p268 = pnand %p266, %p267
      %p269 = pneg %p268
      // Predicated region
      $region37: #{prenorm_linear.1} parent=5 // pred_check
        _
      $region38: #{prenorm_linear.1} parent=5 // pred_check_branch
        %271 = sbr.rel (%p268) target = $region40
      $region39: #{prenorm_linear.1} parent=5 // pred_region
        %s272 = ssub.s32 %s19, 1
        %s273 = sand.u32 %s44, 1
        %s274 = scalar_lea.sflag [#allocation4], %s273
        %s275 = sand.u32 %s44, 1
        %s276 = smul.addr %s275, 8
        %s277 = scalar_lea.vmem [#allocation3], %s276
        // Predicated region
        $region41: #{prenorm_linear.1} parent=39 // pred_check
          %p278 = pneg %p57
        $region42: #{prenorm_linear.1} parent=39 // pred_check_branch
          %280 = sbr.rel (%p278) target = $region44
        $region43: #{prenorm_linear.1} parent=39 // pred_region
          %281 = dma.done %s274, 128
        $region44: #{prenorm_linear.1} parent=39 // pred_fallthru
          _
        // Predicated region
        $region45: #{prenorm_linear.1} parent=39 // pred_check
          %p282 = pneg %p78
        $region46: #{prenorm_linear.1} parent=39 // pred_check_branch
          %284 = sbr.rel (%p282) target = $region48
        $region47: #{prenorm_linear.1} parent=39 // pred_region
          %285 = dma.done [#allocation7], 16
        $region48: #{prenorm_linear.1} parent=39 // pred_fallthru
          _
        // Predicated region
        $region49: #{prenorm_linear.1} parent=39 // pred_check
          %p286 = pneg %p99
        $region50: #{prenorm_linear.1} parent=39 // pred_check_branch
          %288 = sbr.rel (%p286) target = $region52
        $region51: #{prenorm_linear.1} parent=39 // pred_region
          %289 = dma.done [#allocation7], 16
        $region52: #{prenorm_linear.1} parent=39 // pred_fallthru
          _
        // Predicated region
        $region53: #{prenorm_linear.1} parent=39 // pred_check
          %p290 = pneg %p125
        $region54: #{prenorm_linear.1} parent=39 // pred_check_branch
          %292 = sbr.rel (%p290) target = $region56
        $region55: #{prenorm_linear.1} parent=39 // pred_region
          %293 = dma.done [#allocation10], 256
        $region56: #{prenorm_linear.1} parent=39 // pred_fallthru
          _
        // Predicated region
        $region57: #{prenorm_linear.1} parent=39 // pred_check
          %p294 = pneg %p151
        $region58: #{prenorm_linear.1} parent=39 // pred_check_branch
          %296 = sbr.rel (%p294) target = $region60
        $region59: #{prenorm_linear.1} parent=39 // pred_region
          %297 = dma.done [#allocation10], 16
        $region60: #{prenorm_linear.1} parent=39 // pred_fallthru
          _
        %s298 = sand.u32 %s44, 1
        %s299 = scalar_lea.sflag [#allocation4], %s298
        %s300 = sand.u32 %s44, 1
        %s301 = smul.addr %s300, 8
        %s302 = scalar_lea.vmem [#allocation3], %s301
        %p303 = pneg %p57
        %p304 = pneg %p54
        %p305 = pneg %p78
        %p306 = pneg %p75
        %p307 = pneg %p99
        %p308 = pneg %p96
        %p309 = pneg %p125
        %p310 = pneg %p122
        %p311 = pneg %p151
        %p312 = pneg %p148
        %p313 = pneg %p179
        %p314 = pneg %p176
        %s315 = sand.u32 %s166, 1
        %s316 = scalar_lea.sflag [#allocation5], %s315
        %s317 = sand.u32 %s166, 1
        %s318 = smul.addr %s317, 8
        %s319 = scalar_lea.vmem [#allocation12], %s318
        %p321 = scmp.eq.s32.totalorder %s29, 0
        // Predicated region
        $region61: #{prenorm_linear.1} parent=39 // pred_check
          %p322 = pneg %p321
        $region62: #{prenorm_linear.1} parent=39 // pred_check_branch
          %324 = sbr.rel (%p322) target = $region64
        $region63: #{prenorm_linear.1} parent=39 // pred_region
          %v325 = vld [vmem:[%s277] sm:$0xff]
          %vm326 = vcmask 261120
          %v327 = vsel %vm326, %v325, 0.0
          %328 = vadd.xlane.f32.xlu0 %v327
          %v329 = vpop.xlane.xlu0 %328
          %v330 = vrcp.pop 32.0
          %v331 = vmul.f32 %v329, %v330
          %v332 = vmul.f32 %v325, %v325
          %v333 = vsel %vm326, %v332, 0.0
          %334 = vadd.xlane.f32.xlu0 %v333
          %v335 = vpop.xlane.xlu0 %334
          %v336 = vmul.f32 %v335, %v330
          %v337 = vmul.f32 %v331, %v331
          %v338 = vsub.f32 %v336, %v337
          %v339 = vmax.f32 %v338, 0.0
          %v340 = vadd.f32 %v339, 1e-05
          %v341 = vrsqrt.pop %v340
          %v342 = vld [vmem:[#allocation6] sm:$0x1]
          %v344 = vlaneseq
          %v345 = vshrl.u32 %v344, 7
          %v346 = vsub.s32 0, %v345
          %v347 = vrot.slane %v342, %v346
          %v349 = vmul.f32 %v341, %v347
          %v350 = vsub.f32 %v325, %v331
          %v351 = vmul.f32 %v350, %v349
          %v352 = vld [vmem:[#allocation8] sm:$0x1]
          %v354 = vlaneseq
          %v355 = vshrl.u32 %v354, 7
          %v356 = vsub.s32 0, %v355
          %v357 = vrot.slane %v352, %v356
          %v359 = vadd.f32 %v351, %v357
          %v360 = vpack.c.bf16 %v359, %v359
          %vm361 = vcmask 257024
          %362 = vst.msk [vmem:[#allocation2] sm:$0xf] %vm361, %v360
        $region64: #{prenorm_linear.1} parent=39 // pred_fallthru
          _
        %v363 = vld [vmem:[#allocation2] sm:$0xf]
        %v364 = vld [vmem:[#allocation9] sm:$0xf]
        %v365 = vld [vmem:[#allocation9 + $0x4] sm:$0xf]
        %v366 = vld [vmem:[#allocation9 + $0x8] sm:$0xf]
        %v367 = vld [vmem:[#allocation9 + $0xc] sm:$0xf]
        %v368 = vld [vmem:[#allocation11] sm:$0x1]
        %v370 = vlaneseq
        %v371 = vshrl.u32 %v370, 7
        %v372 = vsub.s32 0, %v371
        %v373 = vrot.slane %v368, %v372
        %v379 = vunpack.c.l.b16 %v364
        %v380 = vunpack.c.l.b16 %v365
        %v381 = vunpack.c.l.b16 %v366
        %v382 = vunpack.c.l.b16 %v367
        %v383 = vpack.c.b16 %v380, %v379
        %v384 = vpack.c.b16 %v382, %v381
        %vm387 = vcmask 261120
        %v389 = vsel %vm387, %v363, 0
        %391 = vmatprep.subr.bf16.mxu0 0
        %392 = vmatpush1.bf16.msra.mxu0 %v383
        %393 = vmatprep.subr.bf16.mxu0 0
        %394 = vmatpush1.bf16.msra.mxu0 %v384
        %395 = vmatprep.subr.bf16.mxu0 0
        %396 = vmatpush1.bf16.msra.mxu0 0
        %397 = vmatprep.subr.bf16.mxu0 0
        %398 = vmatpush1.bf16.msra.mxu0 0
        %399 = vmatprep.subr.bf16.mxu0 0
        %400 = vmatpush1.bf16.msra.mxu0 0
        %401 = vmatprep.subr.bf16.mxu0 0
        %402 = vmatpush1.bf16.msra.mxu0 0
        %403 = vmatprep.subr.bf16.mxu0 0
        %404 = vmatpush1.bf16.msra.mxu0 0
        %405 = vmatprep.subr.bf16.mxu0 0
        %406 = vmatpush1.bf16.msra.mxu0 0
        %407 = vmatprep.subr.bf16.mxu0 0
        %408 = vmatpush1.bf16.msra.mxu0 0
        %409 = vmatprep.subr.bf16.mxu0 0
        %410 = vmatpush1.bf16.msra.mxu0 0
        %411 = vmatprep.subr.bf16.mxu0 0
        %412 = vmatpush1.bf16.msra.mxu0 0
        %413 = vmatprep.subr.bf16.mxu0 0
        %414 = vmatpush1.bf16.msra.mxu0 0
        %415 = vmatprep.subr.bf16.mxu0 0
        %416 = vmatpush1.bf16.msra.mxu0 0
        %417 = vmatprep.subr.bf16.mxu0 0
        %418 = vmatpush1.bf16.msra.mxu0 0
        %419 = vmatprep.subr.bf16.mxu0 0
        %420 = vmatpush1.bf16.msra.mxu0 0
        %421 = vmatprep.subr.bf16.mxu0 0
        %422 = vmatpush1.bf16.msra.mxu0 0
        %423 = vmatprep.mubr.bf16.mxu0 0
        %424 = vmatmul.mubr.bf16.gmra.mrb[0].mxu0 %v389
        %v425 = vpop.f32.mrb[0].mxu0
        %v426 = vadd.f32 %v373, %v425
        %v427 = vpop.f32.mrb[0].mxu0
        %v428 = vpop.f32.mrb[0].mxu0
        %v429 = vpop.f32.mrb[0].mxu0
        %430 = vdwg.mxu0
        %431 = vst.msk [vmem:[%s319] sm:$0xff] %vm387, %v426
        %s432 = sand.u32 %s166, 1
        %s433 = scalar_lea.sflag [#allocation5], %s432
        %s434 = sand.u32 %s166, 1
        %s435 = smul.addr %s434, 8
        %s436 = scalar_lea.vmem [#allocation12], %s435
        // Predicated region
        $region65: #{prenorm_linear.1} parent=39 // pred_check
          %p437 = pneg %p176
        $region66: #{prenorm_linear.1} parent=39 // pred_check_branch
          %439 = sbr.rel (%p437) target = $region68
        $region67: #{prenorm_linear.1} parent=39 // pred_region
          %s441 = ssub.s32 128, 128
          %442 = vsyncadd %s433, %s441
          %s443 = sadd.s32 %s29, %s28
          %s444 = smul.addr %s443, 128
          %s445 = scalar_lea.hbm %s5, %s444
          %s447 = sshll.u32 %s436, 4
          %s448 = int_to_ptr.vmem [resolvable:$true] %s447
          %450 = dma.vmem_to_hbm [thread:$0]  %s448, 128, %s445, %s433
        $region68: #{prenorm_linear.1} parent=39 // pred_fallthru
          _
      $region40: #{prenorm_linear.1} parent=5 // pred_fallthru
        _
      %p451 = scmp.le.s32.totalorder 2, %s19
      // Predicated region
      $region69: #{prenorm_linear.1} parent=5 // pred_check
        %p452 = pneg %p451
      $region70: #{prenorm_linear.1} parent=5 // pred_check_branch
        %454 = sbr.rel (%p452) target = $region72
      $region71: #{prenorm_linear.1} parent=5 // pred_region
        %s455 = ssub.s32 %s19, 2
        // Predicated region
        $region73: #{prenorm_linear.1} parent=71 // pred_check
          %p456 = pneg %p182
        $region74: #{prenorm_linear.1} parent=71 // pred_check_branch
          %458 = sbr.rel (%p456) target = $region76
        $region75: #{prenorm_linear.1} parent=71 // pred_region
          %s459 = sand.u32 %s167, 1
          %s460 = scalar_lea.sflag [#allocation5], %s459
          %s461 = sand.u32 %s167, 1
          %s462 = smul.addr %s461, 8
          %s463 = scalar_lea.vmem [#allocation12], %s462
          %464 = dma.done %s460, 128
        $region76: #{prenorm_linear.1} parent=71 // pred_fallthru
          _
      $region72: #{prenorm_linear.1} parent=5 // pred_fallthru
        _
    $region6: #{prenorm_linear.1} parent=1 // loop_footer
      %s23 = sadd.s32 1, %s19
    $region7: #{prenorm_linear.1} parent=1 // loop_footer_branch
      %18 = sbr.rel target = $region3
    $region8: #{prenorm_linear.1} parent=1 // loop_exit
      _
    %465 = vsyncpa [#allocation4], 1
    %s466 = scalar_lea.sflag [#allocation4], 1
    %467 = vsyncpa %s466, 1
    %468 = vsyncpa [#allocation7], 1
    %469 = vsyncpa [#allocation10], 1
    %470 = vsyncpa [#allocation5], 1
    %s471 = scalar_lea.sflag [#allocation5], 1
    %472 = vsyncpa %s471, 1

</llo_original>
